<compile_context>
chip_gen: v7x
topology: tpu7x:2x2x1
jax: 0.10.0
libtpu: 0.0.40
codegen_flags: <defaults>
</compile_context>

<pallas_src>
import jax
import jax.numpy as jnp
import numpy as np
from jax.experimental import pallas as pl
from jax.experimental.pallas import tpu as pltpu


def _round_up(x, m):
    return ((x + m - 1) // m) * m


def _vmem_capacity_bytes():
    try:
        cap = getattr(pltpu.get_tpu_info(), "vmem_capacity_bytes", None)
        if cap:
            return int(cap)
    except Exception:
        pass
    return 64 * 1024 * 1024  # conservative fallback (v7x per-TC VMEM)


def prepare_lmf_params(audio_factor, video_factor, fusion_weights, fusion_bias,
                       *, operand_dtype=jnp.bfloat16):
    """One-time (per weight update) preprocessing of the LMF parameters."""
    rank, d_plus1, out_dim = audio_factor.shape
    op_dt = jnp.dtype(operand_dtype)
    ro = rank * out_dim
    ro_pad = _round_up(ro, 128)          # dense lane packing of the whole rank*O axis

    def split_factor(f):
        # (rank, D+1, O) -> (D+1, rank*O); column index = r*O + o
        f = jnp.transpose(f, (1, 0, 2)).reshape(d_plus1, ro)
        f = jnp.pad(f, ((0, 0), (0, ro_pad - ro)))
        f0 = f[:1].astype(jnp.float32)   # ones-column row, added on the VPU (exact)
        fw = f[1:].astype(op_dt)         # (D, ro_pad) resident MXU operand
        return fw, f0

    afw, af0 = split_factor(audio_factor)
    vfw, vf0 = split_factor(video_factor)

    # Selection / rank-reduction matrix with fusion weights folded in:
    #   sel[r*O + o, o] = fusion_weights[0, r]
    eye = jnp.eye(out_dim, dtype=jnp.float32)
    sel = fusion_weights.reshape(rank, 1, 1).astype(jnp.float32) * eye[None]
    sel = sel.reshape(ro, out_dim)
    sel = jnp.pad(sel, ((0, ro_pad - ro), (0, 0))).astype(op_dt)

    bias = fusion_bias.reshape(1, out_dim).astype(jnp.float32)

    return dict(afw=afw, af0=af0, vfw=vfw, vf0=vf0, sel=sel, bias=bias,
                rank=rank, d=d_plus1 - 1, out_dim=out_dim, ro_pad=ro_pad,
                op_dt=op_dt)


def _make_kernel(op_dt, ro_pad, chunk, use_softmax):
    def kernel(xa_ref, xv_ref, afw_ref, af0_ref, vfw_ref, vf0_ref,
               sel_ref, b_ref, out_ref):
        # xa/xv           : (TB, D)       batch tiles (native dtype, cast on VPU)
        # afw/vfw         : (D, RO)       resident factors (rows 1..D), op dtype
        # af0/vf0         : (1, RO)       resident ones-column rows, f32
        # sel             : (RO, O)       rank-reduction matrix (weights folded)
        # b               : (1, O)        fusion bias, f32
        # out             : (TB, O)       unpadded lane-masked output tile
        xa = xa_ref[...].astype(op_dt)
        xv = xv_ref[...].astype(op_dt)
        acc = None
        for cs in range(0, ro_pad, chunk):       # static, lane-aligned chunks
            ce = min(cs + chunk, ro_pad)
            fa = jnp.dot(xa, afw_ref[:, cs:ce],
                         preferred_element_type=jnp.float32) + af0_ref[:, cs:ce]
            fv = jnp.dot(xv, vfw_ref[:, cs:ce],
                         preferred_element_type=jnp.float32) + vf0_ref[:, cs:ce]
            p = (fa * fv).astype(op_dt)
            contrib = jnp.dot(p, sel_ref[cs:ce, :],
                              preferred_element_type=jnp.float32)
            acc = contrib if acc is None else acc + contrib
        out = acc + b_ref[...]
        if use_softmax:
            m = jnp.max(out, axis=-1, keepdims=True)
            e = jnp.exp(out - m)
            out = e / jnp.sum(e, axis=-1, keepdims=True)
        out_ref[...] = out.astype(out_ref.dtype)
    return kernel


def lmf_forward(audio_x, video_x, params, *, use_softmax=False,
                vmem_budget_bytes=None):
    B, d_in = audio_x.shape
    d, out_dim = params["d"], params["out_dim"]
    ro_pad, op_dt = params["ro_pad"], params["op_dt"]
    assert d_in == d and video_x.shape == (B, d)

    op_bytes = op_dt.itemsize
    x_bytes = audio_x.dtype.itemsize
    chunk = min(ro_pad, 512)

    # ---------------- generation-aware VMEM budgeting ----------------
    vmem_cap = _vmem_capacity_bytes()
    budget = int(0.55 * vmem_cap) if vmem_budget_bytes is None else int(vmem_budget_bytes)
    budget = min(budget, int(0.6 * vmem_cap))

    fixed_bytes = (2 * d * ro_pad * op_bytes      # afw, vfw (resident, single copy)
                   + 2 * ro_pad * 4               # af0, vf0
                   + ro_pad * out_dim * op_bytes  # sel
                   + out_dim * 4)                 # bias

    def step_bytes(t):
        return (2 * 2 * t * d * x_bytes           # xa, xv tiles, double-buffered
                + 2 * t * out_dim * 4             # output tile, double-buffered
                + 3 * t * chunk * 4               # fa / fv / fa*fv f32 temporaries
                + t * chunk * op_bytes            # cast product
                + t * out_dim * 4)                # accumulator

    # ---------------- batch-tile selection ----------------
    tile_align = 16 if op_dt == jnp.dtype(jnp.bfloat16) else 8
    b_round = _round_up(B, tile_align)

    tb = tile_align
    while tb < 2048 and fixed_bytes + step_bytes(tb * 2) <= budget:
        tb *= 2
    tb = min(tb, b_round)
    # Keep >=4 grid steps for large batches (megacore + prefetch overlap), but
    # never shrink tiles below 128 rows just to add steps.
    step_cap = _round_up(max(1, -(-b_round // 4)), tile_align)
    tb = min(tb, max(step_cap, min(128, tb)))
    b_pad = _round_up(B, tb)

    if b_pad != B:
        audio_x = jnp.pad(audio_x, ((0, b_pad - B), (0, 0)))
        video_x = jnp.pad(video_x, ((0, b_pad - B), (0, 0)))

    need = fixed_bytes + step_bytes(tb)
    vmem_limit = int(min(0.9 * vmem_cap, max(32 * 1024 * 1024, 1.5 * need)))

    flops = b_pad * (4 * d * ro_pad + 3 * ro_pad + 2 * ro_pad * out_dim + 2 * out_dim)
    cost = pl.CostEstimate(
        flops=flops,
        transcendentals=b_pad * out_dim if use_softmax else 0,
        bytes_accessed=int(2 * b_pad * d * x_bytes + b_pad * out_dim * 4 + fixed_bytes))

    kernel = _make_kernel(op_dt, ro_pad, chunk, use_softmax)
    vmem = pltpu.MemorySpace.VMEM

    out = pl.pallas_call(
        kernel,
        out_shape=jax.ShapeDtypeStruct((b_pad, out_dim), jnp.float32),
        grid=(b_pad // tb,),
        in_specs=[
            pl.BlockSpec((tb, d), lambda i: (i, 0)),   # audio_x tile
            pl.BlockSpec((tb, d), lambda i: (i, 0)),   # video_x tile
            # Grid-invariant operands: whole-array resident in VMEM (no per-step
            # DMA, no double buffering).
            pl.BlockSpec(memory_space=vmem),           # afw
            pl.BlockSpec(memory_space=vmem),           # af0
            pl.BlockSpec(memory_space=vmem),           # vfw
            pl.BlockSpec(memory_space=vmem),           # vf0
            pl.BlockSpec(memory_space=vmem),           # sel
            pl.BlockSpec(memory_space=vmem),           # bias
        ],
        out_specs=pl.BlockSpec((tb, out_dim), lambda i: (i, 0)),
        compiler_params=pltpu.CompilerParams(
            dimension_semantics=("parallel",),
            vmem_limit_bytes=vmem_limit),
        cost_estimate=cost,
    )(audio_x, video_x, params["afw"], params["af0"],
      params["vfw"], params["vf0"], params["sel"], params["bias"])

    return out if b_pad == B else out[:B]


def lmf_reference(audio_x, video_x, audio_factor, video_factor,
                  fusion_weights, fusion_bias):
    # Faithful JAX transcription of the PyTorch forward (use_softmax=False).
    B = audio_x.shape[0]
    out_dim = audio_factor.shape[-1]
    ah = jnp.concatenate([jnp.ones((B, 1), audio_x.dtype), audio_x], axis=1)
    vh = jnp.concatenate([jnp.ones((B, 1), video_x.dtype), video_x], axis=1)
    fa = jnp.einsum("bd,rdo->rbo", ah, audio_factor)
    fv = jnp.einsum("bd,rdo->rbo", vh, video_factor)
    fz = fa * fv                                                    # (R, B, O)
    out = jnp.matmul(fusion_weights, jnp.transpose(fz, (1, 0, 2)))  # (B, 1, O)
    out = jnp.squeeze(out) + fusion_bias                            # (B, O)
    return out.reshape(-1, out_dim)


def xavier_normal(key, shape):
    # torch.nn.init.xavier_normal_ semantics (gain=1).
    receptive = int(np.prod(shape[2:])) if len(shape) > 2 else 1
    fan_in = shape[1] * receptive
    fan_out = shape[0] * receptive
    std = float(np.sqrt(2.0 / (fan_in + fan_out)))
    return std * jax.random.normal(key, shape, dtype=jnp.float32)


if __name__ == "__main__":
    input_dims = 16      # audio_in == video_in
    output_dim = 32
    rank = 4
    batch = 16

    root = jax.random.PRNGKey(0)
    k_a, k_v, k_af, k_vf, k_w = jax.random.split(root, 5)

    audio_x = jax.random.normal(k_a, (batch, input_dims), dtype=jnp.float32)
    video_x = jax.random.normal(k_v, (batch, input_dims), dtype=jnp.float32)

    audio_factor = xavier_normal(k_af, (rank, input_dims + 1, output_dim))
    video_factor = xavier_normal(k_vf, (rank, input_dims + 1, output_dim))
    fusion_weights = xavier_normal(k_w, (1, rank))
    fusion_bias = jnp.zeros((1, output_dim), dtype=jnp.float32)

    ref = jax.block_until_ready(
        lmf_reference(audio_x, video_x, audio_factor, video_factor,
                      fusion_weights, fusion_bias))

    # Exact-semantics path: f32 matmul operands.
    params_f32 = prepare_lmf_params(audio_factor, video_factor,
                                    fusion_weights, fusion_bias,
                                    operand_dtype=jnp.float32)
    out_f32 = jax.block_until_ready(lmf_forward(audio_x, video_x, params_f32))
    assert out_f32.shape == (batch, output_dim)
    np.testing.assert_allclose(np.asarray(out_f32), np.asarray(ref),
                               rtol=5e-5, atol=5e-5)

    # MXU-optimal path (bf16-native on v5e / v6e / v7x): bf16 operands,
    # f32 accumulate / elementwise.
    params_bf16 = prepare_lmf_params(audio_factor, video_factor,
                                     fusion_weights, fusion_bias,
                                     operand_dtype=jnp.bfloat16)
    out_bf16 = jax.block_until_ready(lmf_forward(audio_x, video_x, params_bf16))
    assert out_bf16.shape == (batch, output_dim)
    np.testing.assert_allclose(np.asarray(out_bf16), np.asarray(ref),
                               rtol=5e-2, atol=2e-2)

    # use_softmax=True epilogue (in-kernel, f32 operands).
    ref_sm = jax.nn.softmax(ref, axis=-1)
    out_sm = jax.block_until_ready(
        lmf_forward(audio_x, video_x, params_f32, use_softmax=True))
    np.testing.assert_allclose(np.asarray(out_sm), np.asarray(ref_sm),
                               rtol=1e-4, atol=1e-5)

    print("KERNEL_OK")
</pallas_src>

<mosaic_0001>
module attributes {stable_mosaic.version = 11 : i64} {
  func.func @kernel(%arg0: i32, %arg1: memref<16x16xf32, #tpu.memory_space<vmem>>, %arg2: memref<16x16xf32, #tpu.memory_space<vmem>>, %arg3: memref<16x128xf32, #tpu.memory_space<vmem>>, %arg4: memref<1x128xf32, #tpu.memory_space<vmem>>, %arg5: memref<16x128xf32, #tpu.memory_space<vmem>>, %arg6: memref<1x128xf32, #tpu.memory_space<vmem>>, %arg7: memref<128x32xf32, #tpu.memory_space<vmem>>, %arg8: memref<1x32xf32, #tpu.memory_space<vmem>>, %arg9: memref<16x32xf32, #tpu.memory_space<vmem>>) attributes {dimension_semantics = [#tpu.dimension_semantics<parallel>], iteration_bounds = array<i64: 1>, scalar_prefetch = 0 : i64, scratch_operands = 0 : i64, tpu.core_type = #tpu.core_type<tc>, window_params = [{transform_indices = @transform_0, window_bounds = array<i64: 16, 16>}, {transform_indices = @transform_1, window_bounds = array<i64: 16, 16>}, {pipeline_mode = #tpu.pipeline_mode<synchronous>, transform_indices = @transform_2, window_bounds = array<i64: 16, 128>}, {pipeline_mode = #tpu.pipeline_mode<synchronous>, transform_indices = @transform_3, window_bounds = array<i64: 1, 128>}, {pipeline_mode = #tpu.pipeline_mode<synchronous>, transform_indices = @transform_4, window_bounds = array<i64: 16, 128>}, {pipeline_mode = #tpu.pipeline_mode<synchronous>, transform_indices = @transform_5, window_bounds = array<i64: 1, 128>}, {pipeline_mode = #tpu.pipeline_mode<synchronous>, transform_indices = @transform_6, window_bounds = array<i64: 128, 32>}, {pipeline_mode = #tpu.pipeline_mode<synchronous>, transform_indices = @transform_7, window_bounds = array<i64: 1, 32>}, {transform_indices = @transform_8, window_bounds = array<i64: 16, 32>}]} {
    %c0 = arith.constant 0 : index
    %c0_0 = arith.constant 0 : index
    %0 = vector.load %arg1[%c0, %c0_0] : memref<16x16xf32, #tpu.memory_space<vmem>>, vector<16x16xf32>
    %c0_1 = arith.constant 0 : index
    %c0_2 = arith.constant 0 : index
    %1 = vector.load %arg2[%c0_1, %c0_2] : memref<16x16xf32, #tpu.memory_space<vmem>>, vector<16x16xf32>
    %c0_3 = arith.constant 0 : index
    %c0_4 = arith.constant 0 : index
    %2 = vector.load %arg3[%c0_3, %c0_4] : memref<16x128xf32, #tpu.memory_space<vmem>>, vector<16x128xf32>
    %cst = arith.constant dense<0.000000e+00> : vector<16x128xf32>
    %3 = tpu.matmul %0, %2, %cst {dimension_numbers = #tpu.dot_dimension_numbers<[1], [0], [0], [1], [0, 0, 1, 1], [], []>} : vector<16x16xf32>, vector<16x128xf32>, vector<16x128xf32> -> vector<16x128xf32>
    %c0_5 = arith.constant 0 : index
    %c0_6 = arith.constant 0 : index
    %4 = vector.load %arg4[%c0_5, %c0_6] : memref<1x128xf32, #tpu.memory_space<vmem>>, vector<1x128xf32>
    %5 = vector.broadcast %4 : vector<1x128xf32> to vector<16x128xf32>
    %6 = arith.addf %3, %5 : vector<16x128xf32>
    %c0_7 = arith.constant 0 : index
    %c0_8 = arith.constant 0 : index
    %7 = vector.load %arg5[%c0_7, %c0_8] : memref<16x128xf32, #tpu.memory_space<vmem>>, vector<16x128xf32>
    %cst_9 = arith.constant dense<0.000000e+00> : vector<16x128xf32>
    %8 = tpu.matmul %1, %7, %cst_9 {dimension_numbers = #tpu.dot_dimension_numbers<[1], [0], [0], [1], [0, 0, 1, 1], [], []>} : vector<16x16xf32>, vector<16x128xf32>, vector<16x128xf32> -> vector<16x128xf32>
    %c0_10 = arith.constant 0 : index
    %c0_11 = arith.constant 0 : index
    %9 = vector.load %arg6[%c0_10, %c0_11] : memref<1x128xf32, #tpu.memory_space<vmem>>, vector<1x128xf32>
    %10 = vector.broadcast %9 : vector<1x128xf32> to vector<16x128xf32>
    %11 = arith.addf %8, %10 : vector<16x128xf32>
    %12 = arith.mulf %6, %11 : vector<16x128xf32>
    %c0_12 = arith.constant 0 : index
    %c0_13 = arith.constant 0 : index
    %13 = vector.load %arg7[%c0_12, %c0_13] : memref<128x32xf32, #tpu.memory_space<vmem>>, vector<128x32xf32>
    %cst_14 = arith.constant dense<0.000000e+00> : vector<16x32xf32>
    %14 = tpu.matmul %12, %13, %cst_14 {dimension_numbers = #tpu.dot_dimension_numbers<[1], [0], [0], [1], [0, 0, 1, 1], [], []>} : vector<16x128xf32>, vector<128x32xf32>, vector<16x32xf32> -> vector<16x32xf32>
    %c0_15 = arith.constant 0 : index
    %c0_16 = arith.constant 0 : index
    %15 = vector.load %arg8[%c0_15, %c0_16] : memref<1x32xf32, #tpu.memory_space<vmem>>, vector<1x32xf32>
    %16 = vector.broadcast %15 : vector<1x32xf32> to vector<16x32xf32>
    %17 = arith.addf %14, %16 : vector<16x32xf32>
    %c0_17 = arith.constant 0 : index
    %c0_18 = arith.constant 0 : index
    %18 = vector.load %arg9[%c0_17, %c0_18] : memref<16x32xf32, #tpu.memory_space<vmem>>, vector<16x32xf32>
    tpu.vector_store %arg9[%c0_17, %c0_18], %17 {strides = array<i32>} : memref<16x32xf32, #tpu.memory_space<vmem>>, vector<16x32xf32>,
    return
  }
  func.func @transform_0(%arg0: i32) -> (i32, i32) {
    %c0_i32 = arith.constant 0 : i32
    %c0_i32_0 = arith.constant 0 : i32
    return %arg0, %c0_i32 : i32, i32
  }
  func.func @transform_1(%arg0: i32) -> (i32, i32) {
    %c0_i32 = arith.constant 0 : i32
    %c0_i32_0 = arith.constant 0 : i32
    return %arg0, %c0_i32 : i32, i32
  }
  func.func @transform_2(%arg0: i32) -> (i32, i32) {
    %c0_i32 = arith.constant 0 : i32
    %c0_i32_0 = arith.constant 0 : i32
    %c0_i32_1 = arith.constant 0 : i32
    return %c0_i32, %c0_i32_0 : i32, i32
  }
  func.func @transform_3(%arg0: i32) -> (i32, i32) {
    %c0_i32 = arith.constant 0 : i32
    %c0_i32_0 = arith.constant 0 : i32
    %c0_i32_1 = arith.constant 0 : i32
    return %c0_i32, %c0_i32_0 : i32, i32
  }
  func.func @transform_4(%arg0: i32) -> (i32, i32) {
    %c0_i32 = arith.constant 0 : i32
    %c0_i32_0 = arith.constant 0 : i32
    %c0_i32_1 = arith.constant 0 : i32
    return %c0_i32, %c0_i32_0 : i32, i32
  }
  func.func @transform_5(%arg0: i32) -> (i32, i32) {
    %c0_i32 = arith.constant 0 : i32
    %c0_i32_0 = arith.constant 0 : i32
    %c0_i32_1 = arith.constant 0 : i32
    return %c0_i32, %c0_i32_0 : i32, i32
  }
  func.func @transform_6(%arg0: i32) -> (i32, i32) {
    %c0_i32 = arith.constant 0 : i32
    %c0_i32_0 = arith.constant 0 : i32
    %c0_i32_1 = arith.constant 0 : i32
    return %c0_i32, %c0_i32_0 : i32, i32
  }
  func.func @transform_7(%arg0: i32) -> (i32, i32) {
    %c0_i32 = arith.constant 0 : i32
    %c0_i32_0 = arith.constant 0 : i32
    %c0_i32_1 = arith.constant 0 : i32
    return %c0_i32, %c0_i32_0 : i32, i32
  }
  func.func @transform_8(%arg0: i32) -> (i32, i32) {
    %c0_i32 = arith.constant 0 : i32
    %c0_i32_0 = arith.constant 0 : i32
    return %arg0, %c0_i32 : i32, i32
  }
}

</mosaic_0001>

<llo_original>
// kernel: tpu_custom_call.1
$region0: #{tpu_custom_call.1}
  #allocation0 [shape = 'u32[]', space=smem, size = 0x4, offset = 0x4, fixed_abs, tag = 'smem constant byte address 0x4 - core index']
  #allocation1 [shape = 'u32[144,128]{1,0:T(1,128)}', space=vmem, size = 0x12000, scoped, tag = 'internal scratch']
  %s0 = inlined_call_operand.vmem [shape: f32[16,16], index: 0, kind: input, shape index: {}]
  %s1 = inlined_call_operand.vmem [shape: f32[16,16], index: 1, kind: input, shape index: {}]
  %s2 = inlined_call_operand.vmem [shape: f32[16,128], index: 2, kind: input, shape index: {}]
  %s3 = inlined_call_operand.vmem [shape: f32[1,128], index: 3, kind: input, shape index: {}]
  %s4 = inlined_call_operand.vmem [shape: f32[16,128], index: 4, kind: input, shape index: {}]
  %s5 = inlined_call_operand.vmem [shape: f32[1,128], index: 5, kind: input, shape index: {}]
  %s6 = inlined_call_operand.vmem [shape: f32[128,32], index: 6, kind: input, shape index: {}]
  %s7 = inlined_call_operand.vmem [shape: f32[1,32], index: 7, kind: input, shape index: {}]
  %s8 = inlined_call_operand.hbm [shape: f32[16,32], index: 8, kind: output, shape index: {}]
  %s9 = sld [smem:[#allocation0]]
  $region42: #{tpu_custom_call.1} parent=0
    _
  %s11 = ssub.s32 1, %s9
  %s12 = scalar_select 0, %s11, %s9
  $region1: #{tpu_custom_call.1} parent=0
    #allocation2 [shape = 'u8[8192]{0}', space=vmem, size = 0x2000, scoped, tag = 'output window, operand 0, single buffered']
    #allocation3 [shape = 's32[1]{0}', space=sflag, size = 0x4, scoped, tag = 'scoped memory for tpu_custom_call.1']
    %13 = vsyncpa [#allocation3], 0
    // Predicated region
    $region2: #{tpu_custom_call.1} parent=1 // pred_check
      _
    $region3: #{tpu_custom_call.1} parent=1 // pred_check_branch
      %15 = sbr.rel (0) target = $region5
    $region4: #{tpu_custom_call.1} parent=1 // pred_region
      _
    $region5: #{tpu_custom_call.1} parent=1 // pred_fallthru
      _
    // Predicated region
    $region6: #{tpu_custom_call.1} parent=1 // pred_check
      _
    $region7: #{tpu_custom_call.1} parent=1 // pred_check_branch
      %17 = sbr.rel (0) target = $region9
    $region8: #{tpu_custom_call.1} parent=1 // pred_region
      _
    $region9: #{tpu_custom_call.1} parent=1 // pred_fallthru
      _
    // Predicated region
    $region10: #{tpu_custom_call.1} parent=1 // pred_check
      _
    $region11: #{tpu_custom_call.1} parent=1 // pred_check_branch
      %19 = sbr.rel (0) target = $region13
    $region12: #{tpu_custom_call.1} parent=1 // pred_region
      _
    $region13: #{tpu_custom_call.1} parent=1 // pred_fallthru
      _
    // Predicated region
    $region14: #{tpu_custom_call.1} parent=1 // pred_check
      _
    $region15: #{tpu_custom_call.1} parent=1 // pred_check_branch
      %21 = sbr.rel (0) target = $region17
    $region16: #{tpu_custom_call.1} parent=1 // pred_region
      _
    $region17: #{tpu_custom_call.1} parent=1 // pred_fallthru
      _
    // Predicated region
    $region18: #{tpu_custom_call.1} parent=1 // pred_check
      _
    $region19: #{tpu_custom_call.1} parent=1 // pred_check_branch
      %23 = sbr.rel (0) target = $region21
    $region20: #{tpu_custom_call.1} parent=1 // pred_region
      _
    $region21: #{tpu_custom_call.1} parent=1 // pred_fallthru
      _
    // Predicated region
    $region22: #{tpu_custom_call.1} parent=1 // pred_check
      _
    $region23: #{tpu_custom_call.1} parent=1 // pred_check_branch
      %25 = sbr.rel (0) target = $region25
    $region24: #{tpu_custom_call.1} parent=1 // pred_region
      _
    $region25: #{tpu_custom_call.1} parent=1 // pred_fallthru
      _
    // Predicated region
    $region26: #{tpu_custom_call.1} parent=1 // pred_check
      _
    $region27: #{tpu_custom_call.1} parent=1 // pred_check_branch
      %27 = sbr.rel (0) target = $region29
    $region28: #{tpu_custom_call.1} parent=1 // pred_region
      _
    $region29: #{tpu_custom_call.1} parent=1 // pred_fallthru
      _
    // Predicated region
    $region30: #{tpu_custom_call.1} parent=1 // pred_check
      _
    $region31: #{tpu_custom_call.1} parent=1 // pred_check_branch
      %29 = sbr.rel (0) target = $region33
    $region32: #{tpu_custom_call.1} parent=1 // pred_region
      _
    $region33: #{tpu_custom_call.1} parent=1 // pred_fallthru
      _
    %v30 = vld [vmem:[%s0] sm:$0xff]
    %v31 = vld [vmem:[%s0 + $0x8] sm:$0xff]
    %v32 = vld [vmem:[%s1] sm:$0xff]
    %v33 = vld [vmem:[%s1 + $0x8] sm:$0xff]
    %v34 = vld [vmem:[%s2] sm:$0xff]
    %v35 = vld [vmem:[%s2 + $0x8] sm:$0xff]
    %v36 = vld [vmem:[%s3] sm:$0x1]
    %v38 = vlaneseq
    %v39 = vshrl.u32 %v38, 7
    %v40 = vsub.s32 0, %v39
    %v41 = vrot.slane %v36, %v40
    %vm43 = vcmask 130048
    %v45 = vsel %vm43, %v30, 0
    %v48 = vsel %vm43, %v31, 0
    %50 = vmatprep.subr.mxu0 0.0
    %51 = vmatpush1.msra.mxu0 %v34
    %52 = vmatprep.subr.mxu0 0.0
    %53 = vmatpush1.msra.mxu0 %v35
    %54 = vmatprep.subr.mxu0 0.0
    %55 = vmatpush1.msra.mxu0 0.0
    %56 = vmatprep.subr.mxu0 0.0
    %57 = vmatpush1.msra.mxu0 0.0
    %58 = vmatprep.subr.mxu0 0.0
    %59 = vmatpush1.msra.mxu0 0.0
    %60 = vmatprep.subr.mxu0 0.0
    %61 = vmatpush1.msra.mxu0 0.0
    %62 = vmatprep.subr.mxu0 0.0
    %63 = vmatpush1.msra.mxu0 0.0
    %64 = vmatprep.subr.mxu0 0.0
    %65 = vmatpush1.msra.mxu0 0.0
    %66 = vmatprep.subr.mxu0 0.0
    %67 = vmatpush1.msra.mxu0 0.0
    %68 = vmatprep.subr.mxu0 0.0
    %69 = vmatpush1.msra.mxu0 0.0
    %70 = vmatprep.subr.mxu0 0.0
    %71 = vmatpush1.msra.mxu0 0.0
    %72 = vmatprep.subr.mxu0 0.0
    %73 = vmatpush1.msra.mxu0 0.0
    %74 = vmatprep.subr.mxu0 0.0
    %75 = vmatpush1.msra.mxu0 0.0
    %76 = vmatprep.subr.mxu0 0.0
    %77 = vmatpush1.msra.mxu0 0.0
    %78 = vmatprep.subr.mxu0 0.0
    %79 = vmatpush1.msra.mxu0 0.0
    %80 = vmatprep.subr.mxu0 0.0
    %81 = vmatpush1.msra.mxu0 0.0
    %82 = vmatprep.subr.mxu0 0.0
    %83 = vmatpush1.msra.mxu0 0.0
    %84 = vmatprep.subr.mxu0 0.0
    %85 = vmatpush1.msra.mxu0 0.0
    %86 = vmatprep.subr.mxu0 0.0
    %87 = vmatpush1.msra.mxu0 0.0
    %88 = vmatprep.subr.mxu0 0.0
    %89 = vmatpush1.msra.mxu0 0.0
    %90 = vmatprep.subr.mxu0 0.0
    %91 = vmatpush1.msra.mxu0 0.0
    %92 = vmatprep.subr.mxu0 0.0
    %93 = vmatpush1.msra.mxu0 0.0
    %94 = vmatprep.subr.mxu0 0.0
    %95 = vmatpush1.msra.mxu0 0.0
    %96 = vmatprep.subr.mxu0 0.0
    %97 = vmatpush1.msra.mxu0 0.0
    %98 = vmatprep.subr.mxu0 0.0
    %99 = vmatpush1.msra.mxu0 0.0
    %100 = vmatprep.subr.mxu0 0.0
    %101 = vmatpush1.msra.mxu0 0.0
    %102 = vmatprep.subr.mxu0 0.0
    %103 = vmatpush1.msra.mxu0 0.0
    %104 = vmatprep.subr.mxu0 0.0
    %105 = vmatpush1.msra.mxu0 0.0
    %106 = vmatprep.subr.mxu0 0.0
    %107 = vmatpush1.msra.mxu0 0.0
    %108 = vmatprep.subr.mxu0 0.0
    %109 = vmatpush1.msra.mxu0 0.0
    %110 = vmatprep.subr.mxu0 0.0
    %111 = vmatpush1.msra.mxu0 0.0
    %112 = vmatprep.subr.mxu0 0.0
    %113 = vmatpush1.msra.mxu0 0.0
    %114 = vmatprep.mubr.f32.mxu0 0.0
    %115 = vmatmul.mubr.f32.gmra.mrb[0].mxu0 %v45
    %v116 = vpop.f32.mrb[0].mxu0
    %v117 = vadd.f32 %v41, %v116
    %v118 = vpop.f32.mrb[0].mxu0
    %119 = vmatprep.mubr.f32.mxu0 0.0
    %120 = vmatmul.mubr.f32.gmra.mrb[0].mxu0 %v48
    %v121 = vpop.f32.mrb[0].mxu0
    %v122 = vadd.f32 %v41, %v121
    %v123 = vpop.f32.mrb[0].mxu0
    %124 = vdwg.mxu0
    %v125 = vld [vmem:[%s4] sm:$0xff]
    %v126 = vld [vmem:[%s4 + $0x8] sm:$0xff]
    %v127 = vld [vmem:[%s5] sm:$0x1]
    %v129 = vlaneseq
    %v130 = vshrl.u32 %v129, 7
    %v131 = vsub.s32 0, %v130
    %v132 = vrot.slane %v127, %v131
    %v135 = vsel %vm43, %v32, 0
    %v138 = vsel %vm43, %v33, 0
    %140 = vmatprep.subr.mxu0 0.0
    %141 = vmatpush1.msra.mxu0 %v125
    %142 = vmatprep.subr.mxu0 0.0
    %143 = vmatpush1.msra.mxu0 %v126
    %144 = vmatprep.subr.mxu0 0.0
    %145 = vmatpush1.msra.mxu0 0.0
    %146 = vmatprep.subr.mxu0 0.0
    %147 = vmatpush1.msra.mxu0 0.0
    %148 = vmatprep.subr.mxu0 0.0
    %149 = vmatpush1.msra.mxu0 0.0
    %150 = vmatprep.subr.mxu0 0.0
    %151 = vmatpush1.msra.mxu0 0.0
    %152 = vmatprep.subr.mxu0 0.0
    %153 = vmatpush1.msra.mxu0 0.0
    %154 = vmatprep.subr.mxu0 0.0
    %155 = vmatpush1.msra.mxu0 0.0
    %156 = vmatprep.subr.mxu0 0.0
    %157 = vmatpush1.msra.mxu0 0.0
    %158 = vmatprep.subr.mxu0 0.0
    %159 = vmatpush1.msra.mxu0 0.0
    %160 = vmatprep.subr.mxu0 0.0
    %161 = vmatpush1.msra.mxu0 0.0
    %162 = vmatprep.subr.mxu0 0.0
    %163 = vmatpush1.msra.mxu0 0.0
    %164 = vmatprep.subr.mxu0 0.0
    %165 = vmatpush1.msra.mxu0 0.0
    %166 = vmatprep.subr.mxu0 0.0
    %167 = vmatpush1.msra.mxu0 0.0
    %168 = vmatprep.subr.mxu0 0.0
    %169 = vmatpush1.msra.mxu0 0.0
    %170 = vmatprep.subr.mxu0 0.0
    %171 = vmatpush1.msra.mxu0 0.0
    %172 = vmatprep.subr.mxu0 0.0
    %173 = vmatpush1.msra.mxu0 0.0
    %174 = vmatprep.subr.mxu0 0.0
    %175 = vmatpush1.msra.mxu0 0.0
    %176 = vmatprep.subr.mxu0 0.0
    %177 = vmatpush1.msra.mxu0 0.0
    %178 = vmatprep.subr.mxu0 0.0
    %179 = vmatpush1.msra.mxu0 0.0
    %180 = vmatprep.subr.mxu0 0.0
    %181 = vmatpush1.msra.mxu0 0.0
    %182 = vmatprep.subr.mxu0 0.0
    %183 = vmatpush1.msra.mxu0 0.0
    %184 = vmatprep.subr.mxu0 0.0
    %185 = vmatpush1.msra.mxu0 0.0
    %186 = vmatprep.subr.mxu0 0.0
    %187 = vmatpush1.msra.mxu0 0.0
    %188 = vmatprep.subr.mxu0 0.0
    %189 = vmatpush1.msra.mxu0 0.0
    %190 = vmatprep.subr.mxu0 0.0
    %191 = vmatpush1.msra.mxu0 0.0
    %192 = vmatprep.subr.mxu0 0.0
    %193 = vmatpush1.msra.mxu0 0.0
    %194 = vmatprep.subr.mxu0 0.0
    %195 = vmatpush1.msra.mxu0 0.0
    %196 = vmatprep.subr.mxu0 0.0
    %197 = vmatpush1.msra.mxu0 0.0
    %198 = vmatprep.subr.mxu0 0.0
    %199 = vmatpush1.msra.mxu0 0.0
    %200 = vmatprep.subr.mxu0 0.0
    %201 = vmatpush1.msra.mxu0 0.0
    %202 = vmatprep.subr.mxu0 0.0
    %203 = vmatpush1.msra.mxu0 0.0
    %204 = vmatprep.mubr.f32.mxu0 0.0
    %205 = vmatmul.mubr.f32.gmra.mrb[0].mxu0 %v135
    %v206 = vpop.f32.mrb[0].mxu0
    %v207 = vadd.f32 %v132, %v206
    %v208 = vpop.f32.mrb[0].mxu0
    %209 = vmatprep.mubr.f32.mxu0 0.0
    %210 = vmatmul.mubr.f32.gmra.mrb[0].mxu0 %v138
    %v211 = vpop.f32.mrb[0].mxu0
    %v212 = vadd.f32 %v132, %v211
    %v213 = vpop.f32.mrb[0].mxu0
    %214 = vdwg.mxu0
    %v215 = vmul.f32 %v117, %v207
    %v216 = vmul.f32 %v122, %v212
    %v217 = vld [vmem:[%s6] sm:$0xff]
    %v218 = vld [vmem:[%s6 + $0x8] sm:$0xff]
    %v219 = vld [vmem:[%s6 + $0x10] sm:$0xff]
    %v220 = vld [vmem:[%s6 + $0x18] sm:$0xff]
    %v221 = vld [vmem:[%s6 + $0x20] sm:$0xff]
    %v222 = vld [vmem:[%s6 + $0x28] sm:$0xff]
    %v223 = vld [vmem:[%s6 + $0x30] sm:$0xff]
    %v224 = vld [vmem:[%s6 + $0x38] sm:$0xff]
    %v225 = vld [vmem:[%s6 + $0x40] sm:$0xff]
    %v226 = vld [vmem:[%s6 + $0x48] sm:$0xff]
    %v227 = vld [vmem:[%s6 + $0x50] sm:$0xff]
    %v228 = vld [vmem:[%s6 + $0x58] sm:$0xff]
    %v229 = vld [vmem:[%s6 + $0x60] sm:$0xff]
    %v230 = vld [vmem:[%s6 + $0x68] sm:$0xff]
    %v231 = vld [vmem:[%s6 + $0x70] sm:$0xff]
    %v232 = vld [vmem:[%s6 + $0x78] sm:$0xff]
    %v233 = vld [vmem:[%s7] sm:$0x1]
    %v235 = vlaneseq
    %v236 = vshrl.u32 %v235, 7
    %v237 = vsub.s32 0, %v236
    %v238 = vrot.slane %v233, %v237
    %240 = vmatprep.subr.mxu0 0.0
    %241 = vmatpush1.msra.mxu0 %v217
    %242 = vmatprep.subr.mxu0 0.0
    %243 = vmatpush1.msra.mxu0 %v218
    %244 = vmatprep.subr.mxu0 0.0
    %245 = vmatpush1.msra.mxu0 %v219
    %246 = vmatprep.subr.mxu0 0.0
    %247 = vmatpush1.msra.mxu0 %v220
    %248 = vmatprep.subr.mxu0 0.0
    %249 = vmatpush1.msra.mxu0 %v221
    %250 = vmatprep.subr.mxu0 0.0
    %251 = vmatpush1.msra.mxu0 %v222
    %252 = vmatprep.subr.mxu0 0.0
    %253 = vmatpush1.msra.mxu0 %v223
    %254 = vmatprep.subr.mxu0 0.0
    %255 = vmatpush1.msra.mxu0 %v224
    %256 = vmatprep.subr.mxu0 0.0
    %257 = vmatpush1.msra.mxu0 %v225
    %258 = vmatprep.subr.mxu0 0.0
    %259 = vmatpush1.msra.mxu0 %v226
    %260 = vmatprep.subr.mxu0 0.0
    %261 = vmatpush1.msra.mxu0 %v227
    %262 = vmatprep.subr.mxu0 0.0
    %263 = vmatpush1.msra.mxu0 %v228
    %264 = vmatprep.subr.mxu0 0.0
    %265 = vmatpush1.msra.mxu0 %v229
    %266 = vmatprep.subr.mxu0 0.0
    %267 = vmatpush1.msra.mxu0 %v230
    %268 = vmatprep.subr.mxu0 0.0
    %269 = vmatpush1.msra.mxu0 %v231
    %270 = vmatprep.subr.mxu0 0.0
    %271 = vmatpush1.msra.mxu0 %v232
    %272 = vmatprep.subr.mxu0 0.0
    %273 = vmatpush1.msra.mxu0 0.0
    %274 = vmatprep.subr.mxu0 0.0
    %275 = vmatpush1.msra.mxu0 0.0
    %276 = vmatprep.subr.mxu0 0.0
    %277 = vmatpush1.msra.mxu0 0.0
    %278 = vmatprep.subr.mxu0 0.0
    %279 = vmatpush1.msra.mxu0 0.0
    %280 = vmatprep.subr.mxu0 0.0
    %281 = vmatpush1.msra.mxu0 0.0
    %282 = vmatprep.subr.mxu0 0.0
    %283 = vmatpush1.msra.mxu0 0.0
    %284 = vmatprep.subr.mxu0 0.0
    %285 = vmatpush1.msra.mxu0 0.0
    %286 = vmatprep.subr.mxu0 0.0
    %287 = vmatpush1.msra.mxu0 0.0
    %288 = vmatprep.subr.mxu0 0.0
    %289 = vmatpush1.msra.mxu0 0.0
    %290 = vmatprep.subr.mxu0 0.0
    %291 = vmatpush1.msra.mxu0 0.0
    %292 = vmatprep.subr.mxu0 0.0
    %293 = vmatpush1.msra.mxu0 0.0
    %294 = vmatprep.subr.mxu0 0.0
    %295 = vmatpush1.msra.mxu0 0.0
    %296 = vmatprep.subr.mxu0 0.0
    %297 = vmatpush1.msra.mxu0 0.0
    %298 = vmatprep.subr.mxu0 0.0
    %299 = vmatpush1.msra.mxu0 0.0
    %300 = vmatprep.subr.mxu0 0.0
    %301 = vmatpush1.msra.mxu0 0.0
    %302 = vmatprep.subr.mxu0 0.0
    %303 = vmatpush1.msra.mxu0 0.0
    %304 = vmatprep.mubr.f32.mxu0 0.0
    %305 = vmatmul.mubr.f32.gmra.mrb[0].mxu0 %v215
    %v306 = vpop.f32.mrb[0].mxu0
    %v307 = vadd.f32 %v238, %v306
    %v308 = vpop.f32.mrb[0].mxu0
    %309 = vmatprep.mubr.f32.mxu0 0.0
    %310 = vmatmul.mubr.f32.gmra.mrb[0].mxu0 %v216
    %v311 = vpop.f32.mrb[0].mxu0
    %v312 = vadd.f32 %v238, %v311
    %v313 = vpop.f32.mrb[0].mxu0
    %314 = vdwg.mxu0
    %vm315 = vcmask 261120
    %316 = vst.msk [vmem:[#allocation2] sm:$0xff] %vm315, %v307
    %317 = vst.msk [vmem:[#allocation2 + $0x8] sm:$0xff] %vm315, %v312
    // Predicated region
    $region34: #{tpu_custom_call.1} parent=1 // pred_check
      _
    $region35: #{tpu_custom_call.1} parent=1 // pred_check_branch
      %319 = sbr.rel (0) target = $region37
    $region36: #{tpu_custom_call.1} parent=1 // pred_region
      %s321 = ssub.s32 256, 256
      %322 = vsyncadd [#allocation3], %s321
      %s323 = sshll.u32 [#allocation2], 4
      %s324 = int_to_ptr.vmem [resolvable:$true] %s323
      %329 = dma.vmem_to_hbm [thread:$0]  %s324, 256, %s8, [#allocation3], 128, 128, 8
    $region37: #{tpu_custom_call.1} parent=1 // pred_fallthru
      _
    // Predicated region
    $region38: #{tpu_custom_call.1} parent=1 // pred_check
      _
    $region39: #{tpu_custom_call.1} parent=1 // pred_check_branch
      %331 = sbr.rel (0) target = $region41
    $region40: #{tpu_custom_call.1} parent=1 // pred_region
      %332 = dma.done [#allocation3], 256
    $region41: #{tpu_custom_call.1} parent=1 // pred_fallthru
      _
    %333 = vsyncpa [#allocation3], 1

</llo_original>
